<compile_context>
chip_gen: v6e
topology: v6e:2x2x1
jax: 0.10.0
libtpu: 0.0.40
codegen_flags: <defaults>
</compile_context>

<pallas_src>
import jax
import jax.numpy as jnp
from jax import lax
from jax.experimental import pallas as pl
from jax.experimental.pallas import tpu as pltpu


def _embed_kernel(idx_ref, w_ref, out_ref):
    # idx_ref: VMEM (TB, 1)  int32   (token ids for this tile)
    # w_ref:   VMEM (V, D)   float32 (full embedding table, constant block)
    # out_ref: VMEM (TB, D)  float32
    tb = out_ref.shape[0]
    v = w_ref.shape[0]

    idx = jnp.clip(idx_ref[...], 0, v - 1)                      # (TB, 1)
    col = lax.broadcasted_iota(jnp.int32, (tb, v), 1)           # (TB, V)
    one_hot = (col == idx).astype(jnp.float32)                  # (TB, V)
    # Vectorized gather as a single MXU matmul: one_hot @ table -> (TB, D).
    out_ref[...] = jnp.dot(one_hot, w_ref[...],
                           preferred_element_type=jnp.float32)


def word_embedder(indices, wt_params, *, token_block=256):
    """Pallas equivalent of WordEmbedder.forward: wt_params[indices].

    indices:   integer array of shape (B, S)
    wt_params: array of shape (V, D); cast to float32 (module stores .float() weights)
    returns:   float32 array of shape (B, S, D)
    """
    B, S = indices.shape
    V, D = wt_params.shape
    wt = wt_params.astype(jnp.float32)   # nn.Parameter(torch.from_numpy(w).float())

    N = B * S
    n_blocks = pl.cdiv(N, token_block)
    n_pad = n_blocks * token_block

    flat_idx = indices.reshape(N).astype(jnp.int32)
    if n_pad != N:
        flat_idx = jnp.pad(flat_idx, (0, n_pad - N))            # pad with id 0 (valid)
    flat_idx = flat_idx.reshape(n_pad, 1)

    out_flat = pl.pallas_call(
        _embed_kernel,
        out_shape=jax.ShapeDtypeStruct((n_pad, D), jnp.float32),
        grid=(n_blocks,),
        in_specs=[
            # per-block token ids (lives in VMEM, feeds the one-hot build)
            pl.BlockSpec((token_block, 1), lambda i: (i, 0)),
            # full embedding table, same (only) block every grid step
            pl.BlockSpec((V, D), lambda i: (0, 0)),
        ],
        out_specs=pl.BlockSpec((token_block, D), lambda i: (i, 0)),
        compiler_params=pltpu.CompilerParams(
            dimension_semantics=("parallel",),
        ),
    )(flat_idx, wt)

    return out_flat[:N].reshape(B, S, D)


if __name__ == "__main__":
    key = jax.random.PRNGKey(0)
    k_w, k_idx = jax.random.split(key)

    V, D = 16, 128          # vocab size, embedding dim (lane-friendly last dim)
    B, S = 2, 8             # batch, sequence length  (N=16 -> exercises the pad path)

    wt_params = jax.random.normal(k_w, (V, D), dtype=jnp.float32)
    indices = jax.random.randint(k_idx, (B, S), 0, V, dtype=jnp.int32)

    out = word_embedder(indices, wt_params)
    out = jax.block_until_ready(out)

    # Reference: plain JAX gather (== torch nn.Embedding lookup).
    ref = jnp.take(wt_params, indices.reshape(-1), axis=0).reshape(B, S, D)
    assert out.shape == (B, S, D)
    assert out.dtype == jnp.float32
    assert jnp.allclose(out, ref), "mismatch vs reference embedding lookup"

    print("KERNEL_OK")
</pallas_src>

<mosaic_0001>
module attributes {stable_mosaic.version = 11 : i64} {
  func.func @_embed_kernel(%arg0: i32, %arg1: memref<256x1xi32, #tpu.memory_space<vmem>>, %arg2: memref<16x128xf32, #tpu.memory_space<vmem>>, %arg3: memref<256x128xf32, #tpu.memory_space<vmem>>) attributes {dimension_semantics = [#tpu.dimension_semantics<parallel>], iteration_bounds = array<i64: 1>, scalar_prefetch = 0 : i64, scratch_operands = 0 : i64, tpu.core_type = #tpu.core_type<tc>, window_params = [{transform_indices = @transform_0, window_bounds = array<i64: 256, 1>}, {pipeline_mode = #tpu.pipeline_mode<synchronous>, transform_indices = @transform_1, window_bounds = array<i64: 16, 128>}, {transform_indices = @transform_2, window_bounds = array<i64: 256, 128>}]} {
    %c0 = arith.constant 0 : index
    %c0_0 = arith.constant 0 : index
    %0 = vector.load %arg1[%c0, %c0_0] : memref<256x1xi32, #tpu.memory_space<vmem>>, vector<256x1xi32>
    %c0_i32 = arith.constant 0 : i32
    %c15_i32 = arith.constant 15 : i32
    %1 = vector.broadcast %c0_i32 : i32 to vector<256x1xi32>
    %2 = arith.maxsi %1, %0 : vector<256x1xi32>
    %3 = vector.broadcast %c15_i32 : i32 to vector<256x1xi32>
    %4 = arith.minsi %3, %2 : vector<256x1xi32>
    %5 = tpu.iota {dimensions = array<i32: 1>} : vector<256x16xi32>
    %6 = vector.broadcast %4 : vector<256x1xi32> to vector<256x16xi32>
    %7 = arith.cmpi eq, %5, %6 : vector<256x16xi32>
    %8 = arith.extui %7 : vector<256x16xi1> to vector<256x16xi32>
    %9 = arith.sitofp %8 : vector<256x16xi32> to vector<256x16xf32>
    %c0_1 = arith.constant 0 : index
    %c0_2 = arith.constant 0 : index
    %10 = vector.load %arg2[%c0_1, %c0_2] : memref<16x128xf32, #tpu.memory_space<vmem>>, vector<16x128xf32>
    %cst = arith.constant dense<0.000000e+00> : vector<256x128xf32>
    %11 = tpu.matmul %9, %10, %cst {dimension_numbers = #tpu.dot_dimension_numbers<[1], [0], [0], [1], [0, 0, 1, 1], [], []>} : vector<256x16xf32>, vector<16x128xf32>, vector<256x128xf32> -> vector<256x128xf32>
    %c0_3 = arith.constant 0 : index
    %c0_4 = arith.constant 0 : index
    %12 = vector.load %arg3[%c0_3, %c0_4] : memref<256x128xf32, #tpu.memory_space<vmem>>, vector<256x128xf32>
    tpu.vector_store %arg3[%c0_3, %c0_4], %11 {strides = array<i32>} : memref<256x128xf32, #tpu.memory_space<vmem>>, vector<256x128xf32>,
    return
  }
  func.func @transform_0(%arg0: i32) -> (i32, i32) {
    %c0_i32 = arith.constant 0 : i32
    %c0_i32_0 = arith.constant 0 : i32
    return %arg0, %c0_i32 : i32, i32
  }
  func.func @transform_1(%arg0: i32) -> (i32, i32) {
    %c0_i32 = arith.constant 0 : i32
    %c0_i32_0 = arith.constant 0 : i32
    %c0_i32_1 = arith.constant 0 : i32
    return %c0_i32, %c0_i32_0 : i32, i32
  }
  func.func @transform_2(%arg0: i32) -> (i32, i32) {
    %c0_i32 = arith.constant 0 : i32
    %c0_i32_0 = arith.constant 0 : i32
    return %arg0, %c0_i32 : i32, i32
  }
}

</mosaic_0001>

<llo_original>
// kernel: tpu_custom_call.1
$region0: #{tpu_custom_call.1}
  #allocation0 [shape = 'u32[]', space=smem, size = 0x4, offset = 0x4, fixed_abs, tag = 'smem constant byte address 0x4 - core index']
  #allocation1 [shape = 'u32[144,128]{1,0:T(1,128)}', space=vmem, size = 0x12000, scoped, tag = 'internal scratch']
  %s0 = inlined_call_operand.vmem [shape: s32[256,1], index: 0, kind: input, shape index: {}]
  %s1 = inlined_call_operand.vmem [shape: f32[16,128], index: 1, kind: input, shape index: {}]
  %s2 = inlined_call_operand.hbm [shape: f32[256,128], index: 2, kind: output, shape index: {}]
  %s3 = sld [smem:[#allocation0]]
  $region18: #{tpu_custom_call.1} parent=0
    _
  %s5 = ssub.s32 1, %s3
  %s6 = scalar_select 0, %s5, %s3
  $region1: #{tpu_custom_call.1} parent=0
    #allocation2 [shape = 'u8[131072]{0}', space=vmem, size = 0x20000, scoped, tag = 'output window, operand 0, single buffered']
    #allocation3 [shape = 's32[1]{0}', space=sflag, size = 0x4, scoped, tag = 'scoped memory for tpu_custom_call.1']
    %7 = vsyncpa [#allocation3], 0
    // Predicated region
    $region2: #{tpu_custom_call.1} parent=1 // pred_check
      _
    $region3: #{tpu_custom_call.1} parent=1 // pred_check_branch
      %9 = sbr.rel (0) target = $region5
    $region4: #{tpu_custom_call.1} parent=1 // pred_region
      _
    $region5: #{tpu_custom_call.1} parent=1 // pred_fallthru
      _
    // Predicated region
    $region6: #{tpu_custom_call.1} parent=1 // pred_check
      _
    $region7: #{tpu_custom_call.1} parent=1 // pred_check_branch
      %11 = sbr.rel (0) target = $region9
    $region8: #{tpu_custom_call.1} parent=1 // pred_region
      _
    $region9: #{tpu_custom_call.1} parent=1 // pred_fallthru
      _
    %v12 = vld [vmem:[%s0] sm:$0xff]
    %v13 = vld [vmem:[%s0 + $0x8] sm:$0xff]
    %v14 = vld [vmem:[%s0 + $0x10] sm:$0xff]
    %v15 = vld [vmem:[%s0 + $0x18] sm:$0xff]
    %v16 = vld [vmem:[%s0 + $0x20] sm:$0xff]
    %v17 = vld [vmem:[%s0 + $0x28] sm:$0xff]
    %v18 = vld [vmem:[%s0 + $0x30] sm:$0xff]
    %v19 = vld [vmem:[%s0 + $0x38] sm:$0xff]
    %v20 = vld [vmem:[%s0 + $0x40] sm:$0xff]
    %v21 = vld [vmem:[%s0 + $0x48] sm:$0xff]
    %v22 = vld [vmem:[%s0 + $0x50] sm:$0xff]
    %v23 = vld [vmem:[%s0 + $0x58] sm:$0xff]
    %v24 = vld [vmem:[%s0 + $0x60] sm:$0xff]
    %v25 = vld [vmem:[%s0 + $0x68] sm:$0xff]
    %v26 = vld [vmem:[%s0 + $0x70] sm:$0xff]
    %v27 = vld [vmem:[%s0 + $0x78] sm:$0xff]
    %v28 = vld [vmem:[%s0 + $0x80] sm:$0xff]
    %v29 = vld [vmem:[%s0 + $0x88] sm:$0xff]
    %v30 = vld [vmem:[%s0 + $0x90] sm:$0xff]
    %v31 = vld [vmem:[%s0 + $0x98] sm:$0xff]
    %v32 = vld [vmem:[%s0 + $0xa0] sm:$0xff]
    %v33 = vld [vmem:[%s0 + $0xa8] sm:$0xff]
    %v34 = vld [vmem:[%s0 + $0xb0] sm:$0xff]
    %v35 = vld [vmem:[%s0 + $0xb8] sm:$0xff]
    %v36 = vld [vmem:[%s0 + $0xc0] sm:$0xff]
    %v37 = vld [vmem:[%s0 + $0xc8] sm:$0xff]
    %v38 = vld [vmem:[%s0 + $0xd0] sm:$0xff]
    %v39 = vld [vmem:[%s0 + $0xd8] sm:$0xff]
    %v40 = vld [vmem:[%s0 + $0xe0] sm:$0xff]
    %v41 = vld [vmem:[%s0 + $0xe8] sm:$0xff]
    %v42 = vld [vmem:[%s0 + $0xf0] sm:$0xff]
    %v43 = vld [vmem:[%s0 + $0xf8] sm:$0xff]
    %vm44 = vcmp.gt.s32.totalorder %v12, 0
    %v45 = vsel %vm44, %v12, 0
    %vm46 = vcmp.gt.s32.totalorder %v13, 0
    %v47 = vsel %vm46, %v13, 0
    %vm48 = vcmp.gt.s32.totalorder %v14, 0
    %v49 = vsel %vm48, %v14, 0
    %vm50 = vcmp.gt.s32.totalorder %v15, 0
    %v51 = vsel %vm50, %v15, 0
    %vm52 = vcmp.gt.s32.totalorder %v16, 0
    %v53 = vsel %vm52, %v16, 0
    %vm54 = vcmp.gt.s32.totalorder %v17, 0
    %v55 = vsel %vm54, %v17, 0
    %vm56 = vcmp.gt.s32.totalorder %v18, 0
    %v57 = vsel %vm56, %v18, 0
    %vm58 = vcmp.gt.s32.totalorder %v19, 0
    %v59 = vsel %vm58, %v19, 0
    %vm60 = vcmp.gt.s32.totalorder %v20, 0
    %v61 = vsel %vm60, %v20, 0
    %vm62 = vcmp.gt.s32.totalorder %v21, 0
    %v63 = vsel %vm62, %v21, 0
    %vm64 = vcmp.gt.s32.totalorder %v22, 0
    %v65 = vsel %vm64, %v22, 0
    %vm66 = vcmp.gt.s32.totalorder %v23, 0
    %v67 = vsel %vm66, %v23, 0
    %vm68 = vcmp.gt.s32.totalorder %v24, 0
    %v69 = vsel %vm68, %v24, 0
    %vm70 = vcmp.gt.s32.totalorder %v25, 0
    %v71 = vsel %vm70, %v25, 0
    %vm72 = vcmp.gt.s32.totalorder %v26, 0
    %v73 = vsel %vm72, %v26, 0
    %vm74 = vcmp.gt.s32.totalorder %v27, 0
    %v75 = vsel %vm74, %v27, 0
    %vm76 = vcmp.gt.s32.totalorder %v28, 0
    %v77 = vsel %vm76, %v28, 0
    %vm78 = vcmp.gt.s32.totalorder %v29, 0
    %v79 = vsel %vm78, %v29, 0
    %vm80 = vcmp.gt.s32.totalorder %v30, 0
    %v81 = vsel %vm80, %v30, 0
    %vm82 = vcmp.gt.s32.totalorder %v31, 0
    %v83 = vsel %vm82, %v31, 0
    %vm84 = vcmp.gt.s32.totalorder %v32, 0
    %v85 = vsel %vm84, %v32, 0
    %vm86 = vcmp.gt.s32.totalorder %v33, 0
    %v87 = vsel %vm86, %v33, 0
    %vm88 = vcmp.gt.s32.totalorder %v34, 0
    %v89 = vsel %vm88, %v34, 0
    %vm90 = vcmp.gt.s32.totalorder %v35, 0
    %v91 = vsel %vm90, %v35, 0
    %vm92 = vcmp.gt.s32.totalorder %v36, 0
    %v93 = vsel %vm92, %v36, 0
    %vm94 = vcmp.gt.s32.totalorder %v37, 0
    %v95 = vsel %vm94, %v37, 0
    %vm96 = vcmp.gt.s32.totalorder %v38, 0
    %v97 = vsel %vm96, %v38, 0
    %vm98 = vcmp.gt.s32.totalorder %v39, 0
    %v99 = vsel %vm98, %v39, 0
    %vm100 = vcmp.gt.s32.totalorder %v40, 0
    %v101 = vsel %vm100, %v40, 0
    %vm102 = vcmp.gt.s32.totalorder %v41, 0
    %v103 = vsel %vm102, %v41, 0
    %vm104 = vcmp.gt.s32.totalorder %v42, 0
    %v105 = vsel %vm104, %v42, 0
    %vm106 = vcmp.gt.s32.totalorder %v43, 0
    %v107 = vsel %vm106, %v43, 0
    %vm108 = vcmp.lt.s32.totalorder %v45, 15
    %v109 = vsel %vm108, %v45, 15
    %vm110 = vcmp.lt.s32.totalorder %v47, 15
    %v111 = vsel %vm110, %v47, 15
    %vm112 = vcmp.lt.s32.totalorder %v49, 15
    %v113 = vsel %vm112, %v49, 15
    %vm114 = vcmp.lt.s32.totalorder %v51, 15
    %v115 = vsel %vm114, %v51, 15
    %vm116 = vcmp.lt.s32.totalorder %v53, 15
    %v117 = vsel %vm116, %v53, 15
    %vm118 = vcmp.lt.s32.totalorder %v55, 15
    %v119 = vsel %vm118, %v55, 15
    %vm120 = vcmp.lt.s32.totalorder %v57, 15
    %v121 = vsel %vm120, %v57, 15
    %vm122 = vcmp.lt.s32.totalorder %v59, 15
    %v123 = vsel %vm122, %v59, 15
    %vm124 = vcmp.lt.s32.totalorder %v61, 15
    %v125 = vsel %vm124, %v61, 15
    %vm126 = vcmp.lt.s32.totalorder %v63, 15
    %v127 = vsel %vm126, %v63, 15
    %vm128 = vcmp.lt.s32.totalorder %v65, 15
    %v129 = vsel %vm128, %v65, 15
    %vm130 = vcmp.lt.s32.totalorder %v67, 15
    %v131 = vsel %vm130, %v67, 15
    %vm132 = vcmp.lt.s32.totalorder %v69, 15
    %v133 = vsel %vm132, %v69, 15
    %vm134 = vcmp.lt.s32.totalorder %v71, 15
    %v135 = vsel %vm134, %v71, 15
    %vm136 = vcmp.lt.s32.totalorder %v73, 15
    %v137 = vsel %vm136, %v73, 15
    %vm138 = vcmp.lt.s32.totalorder %v75, 15
    %v139 = vsel %vm138, %v75, 15
    %vm140 = vcmp.lt.s32.totalorder %v77, 15
    %v141 = vsel %vm140, %v77, 15
    %vm142 = vcmp.lt.s32.totalorder %v79, 15
    %v143 = vsel %vm142, %v79, 15
    %vm144 = vcmp.lt.s32.totalorder %v81, 15
    %v145 = vsel %vm144, %v81, 15
    %vm146 = vcmp.lt.s32.totalorder %v83, 15
    %v147 = vsel %vm146, %v83, 15
    %vm148 = vcmp.lt.s32.totalorder %v85, 15
    %v149 = vsel %vm148, %v85, 15
    %vm150 = vcmp.lt.s32.totalorder %v87, 15
    %v151 = vsel %vm150, %v87, 15
    %vm152 = vcmp.lt.s32.totalorder %v89, 15
    %v153 = vsel %vm152, %v89, 15
    %vm154 = vcmp.lt.s32.totalorder %v91, 15
    %v155 = vsel %vm154, %v91, 15
    %vm156 = vcmp.lt.s32.totalorder %v93, 15
    %v157 = vsel %vm156, %v93, 15
    %vm158 = vcmp.lt.s32.totalorder %v95, 15
    %v159 = vsel %vm158, %v95, 15
    %vm160 = vcmp.lt.s32.totalorder %v97, 15
    %v161 = vsel %vm160, %v97, 15
    %vm162 = vcmp.lt.s32.totalorder %v99, 15
    %v163 = vsel %vm162, %v99, 15
    %vm164 = vcmp.lt.s32.totalorder %v101, 15
    %v165 = vsel %vm164, %v101, 15
    %vm166 = vcmp.lt.s32.totalorder %v103, 15
    %v167 = vsel %vm166, %v103, 15
    %vm168 = vcmp.lt.s32.totalorder %v105, 15
    %v169 = vsel %vm168, %v105, 15
    %vm170 = vcmp.lt.s32.totalorder %v107, 15
    %v171 = vsel %vm170, %v107, 15
    %v172 = vlaneseq
    %v173 = vand.u32 %v172, 127
    %174 = vset.pattern.permute.xlu0 0
    %175 = vperm.xlu0 %174, %v109
    %v176 = vpop.permute.xlu0 %175
    %177 = vset.pattern.permute.xlu0 0
    %178 = vperm.xlu0 %177, %v111
    %v179 = vpop.permute.xlu0 %178
    %180 = vset.pattern.permute.xlu0 0
    %181 = vperm.xlu0 %180, %v113
    %v182 = vpop.permute.xlu0 %181
    %183 = vset.pattern.permute.xlu0 0
    %184 = vperm.xlu0 %183, %v115
    %v185 = vpop.permute.xlu0 %184
    %186 = vset.pattern.permute.xlu0 0
    %187 = vperm.xlu0 %186, %v117
    %v188 = vpop.permute.xlu0 %187
    %189 = vset.pattern.permute.xlu0 0
    %190 = vperm.xlu0 %189, %v119
    %v191 = vpop.permute.xlu0 %190
    %192 = vset.pattern.permute.xlu0 0
    %193 = vperm.xlu0 %192, %v121
    %v194 = vpop.permute.xlu0 %193
    %195 = vset.pattern.permute.xlu0 0
    %196 = vperm.xlu0 %195, %v123
    %v197 = vpop.permute.xlu0 %196
    %198 = vset.pattern.permute.xlu0 0
    %199 = vperm.xlu0 %198, %v125
    %v200 = vpop.permute.xlu0 %199
    %201 = vset.pattern.permute.xlu0 0
    %202 = vperm.xlu0 %201, %v127
    %v203 = vpop.permute.xlu0 %202
    %204 = vset.pattern.permute.xlu0 0
    %205 = vperm.xlu0 %204, %v129
    %v206 = vpop.permute.xlu0 %205
    %207 = vset.pattern.permute.xlu0 0
    %208 = vperm.xlu0 %207, %v131
    %v209 = vpop.permute.xlu0 %208
    %210 = vset.pattern.permute.xlu0 0
    %211 = vperm.xlu0 %210, %v133
    %v212 = vpop.permute.xlu0 %211
    %213 = vset.pattern.permute.xlu0 0
    %214 = vperm.xlu0 %213, %v135
    %v215 = vpop.permute.xlu0 %214
    %216 = vset.pattern.permute.xlu0 0
    %217 = vperm.xlu0 %216, %v137
    %v218 = vpop.permute.xlu0 %217
    %219 = vset.pattern.permute.xlu0 0
    %220 = vperm.xlu0 %219, %v139
    %v221 = vpop.permute.xlu0 %220
    %222 = vset.pattern.permute.xlu0 0
    %223 = vperm.xlu0 %222, %v141
    %v224 = vpop.permute.xlu0 %223
    %225 = vset.pattern.permute.xlu0 0
    %226 = vperm.xlu0 %225, %v143
    %v227 = vpop.permute.xlu0 %226
    %228 = vset.pattern.permute.xlu0 0
    %229 = vperm.xlu0 %228, %v145
    %v230 = vpop.permute.xlu0 %229
    %231 = vset.pattern.permute.xlu0 0
    %232 = vperm.xlu0 %231, %v147
    %v233 = vpop.permute.xlu0 %232
    %234 = vset.pattern.permute.xlu0 0
    %235 = vperm.xlu0 %234, %v149
    %v236 = vpop.permute.xlu0 %235
    %237 = vset.pattern.permute.xlu0 0
    %238 = vperm.xlu0 %237, %v151
    %v239 = vpop.permute.xlu0 %238
    %240 = vset.pattern.permute.xlu0 0
    %241 = vperm.xlu0 %240, %v153
    %v242 = vpop.permute.xlu0 %241
    %243 = vset.pattern.permute.xlu0 0
    %244 = vperm.xlu0 %243, %v155
    %v245 = vpop.permute.xlu0 %244
    %246 = vset.pattern.permute.xlu0 0
    %247 = vperm.xlu0 %246, %v157
    %v248 = vpop.permute.xlu0 %247
    %249 = vset.pattern.permute.xlu0 0
    %250 = vperm.xlu0 %249, %v159
    %v251 = vpop.permute.xlu0 %250
    %252 = vset.pattern.permute.xlu0 0
    %253 = vperm.xlu0 %252, %v161
    %v254 = vpop.permute.xlu0 %253
    %255 = vset.pattern.permute.xlu0 0
    %256 = vperm.xlu0 %255, %v163
    %v257 = vpop.permute.xlu0 %256
    %258 = vset.pattern.permute.xlu0 0
    %259 = vperm.xlu0 %258, %v165
    %v260 = vpop.permute.xlu0 %259
    %261 = vset.pattern.permute.xlu0 0
    %262 = vperm.xlu0 %261, %v167
    %v263 = vpop.permute.xlu0 %262
    %264 = vset.pattern.permute.xlu0 0
    %265 = vperm.xlu0 %264, %v169
    %v266 = vpop.permute.xlu0 %265
    %267 = vset.pattern.permute.xlu0 0
    %268 = vperm.xlu0 %267, %v171
    %v269 = vpop.permute.xlu0 %268
    %vm270 = vcmp.eq.s32.totalorder %v173, %v176
    %vm271 = vcmp.eq.s32.totalorder %v173, %v179
    %vm272 = vcmp.eq.s32.totalorder %v173, %v182
    %vm273 = vcmp.eq.s32.totalorder %v173, %v185
    %vm274 = vcmp.eq.s32.totalorder %v173, %v188
    %vm275 = vcmp.eq.s32.totalorder %v173, %v191
    %vm276 = vcmp.eq.s32.totalorder %v173, %v194
    %vm277 = vcmp.eq.s32.totalorder %v173, %v197
    %vm278 = vcmp.eq.s32.totalorder %v173, %v200
    %vm279 = vcmp.eq.s32.totalorder %v173, %v203
    %vm280 = vcmp.eq.s32.totalorder %v173, %v206
    %vm281 = vcmp.eq.s32.totalorder %v173, %v209
    %vm282 = vcmp.eq.s32.totalorder %v173, %v212
    %vm283 = vcmp.eq.s32.totalorder %v173, %v215
    %vm284 = vcmp.eq.s32.totalorder %v173, %v218
    %vm285 = vcmp.eq.s32.totalorder %v173, %v221
    %vm286 = vcmp.eq.s32.totalorder %v173, %v224
    %vm287 = vcmp.eq.s32.totalorder %v173, %v227
    %vm288 = vcmp.eq.s32.totalorder %v173, %v230
    %vm289 = vcmp.eq.s32.totalorder %v173, %v233
    %vm290 = vcmp.eq.s32.totalorder %v173, %v236
    %vm291 = vcmp.eq.s32.totalorder %v173, %v239
    %vm292 = vcmp.eq.s32.totalorder %v173, %v242
    %vm293 = vcmp.eq.s32.totalorder %v173, %v245
    %vm294 = vcmp.eq.s32.totalorder %v173, %v248
    %vm295 = vcmp.eq.s32.totalorder %v173, %v251
    %vm296 = vcmp.eq.s32.totalorder %v173, %v254
    %vm297 = vcmp.eq.s32.totalorder %v173, %v257
    %vm298 = vcmp.eq.s32.totalorder %v173, %v260
    %vm299 = vcmp.eq.s32.totalorder %v173, %v263
    %vm300 = vcmp.eq.s32.totalorder %v173, %v266
    %vm301 = vcmp.eq.s32.totalorder %v173, %v269
    %v302 = vsel %vm270, 1, 0
    %v303 = vsel %vm271, 1, 0
    %v304 = vsel %vm272, 1, 0
    %v305 = vsel %vm273, 1, 0
    %v306 = vsel %vm274, 1, 0
    %v307 = vsel %vm275, 1, 0
    %v308 = vsel %vm276, 1, 0
    %v309 = vsel %vm277, 1, 0
    %v310 = vsel %vm278, 1, 0
    %v311 = vsel %vm279, 1, 0
    %v312 = vsel %vm280, 1, 0
    %v313 = vsel %vm281, 1, 0
    %v314 = vsel %vm282, 1, 0
    %v315 = vsel %vm283, 1, 0
    %v316 = vsel %vm284, 1, 0
    %v317 = vsel %vm285, 1, 0
    %v318 = vsel %vm286, 1, 0
    %v319 = vsel %vm287, 1, 0
    %v320 = vsel %vm288, 1, 0
    %v321 = vsel %vm289, 1, 0
    %v322 = vsel %vm290, 1, 0
    %v323 = vsel %vm291, 1, 0
    %v324 = vsel %vm292, 1, 0
    %v325 = vsel %vm293, 1, 0
    %v326 = vsel %vm294, 1, 0
    %v327 = vsel %vm295, 1, 0
    %v328 = vsel %vm296, 1, 0
    %v329 = vsel %vm297, 1, 0
    %v330 = vsel %vm298, 1, 0
    %v331 = vsel %vm299, 1, 0
    %v332 = vsel %vm300, 1, 0
    %v333 = vsel %vm301, 1, 0
    %v334 = vcvt.s32.f32 %v302
    %v335 = vcvt.s32.f32 %v303
    %v336 = vcvt.s32.f32 %v304
    %v337 = vcvt.s32.f32 %v305
    %v338 = vcvt.s32.f32 %v306
    %v339 = vcvt.s32.f32 %v307
    %v340 = vcvt.s32.f32 %v308
    %v341 = vcvt.s32.f32 %v309
    %v342 = vcvt.s32.f32 %v310
    %v343 = vcvt.s32.f32 %v311
    %v344 = vcvt.s32.f32 %v312
    %v345 = vcvt.s32.f32 %v313
    %v346 = vcvt.s32.f32 %v314
    %v347 = vcvt.s32.f32 %v315
    %v348 = vcvt.s32.f32 %v316
    %v349 = vcvt.s32.f32 %v317
    %v350 = vcvt.s32.f32 %v318
    %v351 = vcvt.s32.f32 %v319
    %v352 = vcvt.s32.f32 %v320
    %v353 = vcvt.s32.f32 %v321
    %v354 = vcvt.s32.f32 %v322
    %v355 = vcvt.s32.f32 %v323
    %v356 = vcvt.s32.f32 %v324
    %v357 = vcvt.s32.f32 %v325
    %v358 = vcvt.s32.f32 %v326
    %v359 = vcvt.s32.f32 %v327
    %v360 = vcvt.s32.f32 %v328
    %v361 = vcvt.s32.f32 %v329
    %v362 = vcvt.s32.f32 %v330
    %v363 = vcvt.s32.f32 %v331
    %v364 = vcvt.s32.f32 %v332
    %v365 = vcvt.s32.f32 %v333
    %v366 = vld [vmem:[%s1] sm:$0xff]
    %v367 = vld [vmem:[%s1 + $0x8] sm:$0xff]
    %vm368 = vcmask 130048
    %v370 = vsel %vm368, %v334, 0
    %v373 = vsel %vm368, %v335, 0
    %v376 = vsel %vm368, %v336, 0
    %v379 = vsel %vm368, %v337, 0
    %v382 = vsel %vm368, %v338, 0
    %v385 = vsel %vm368, %v339, 0
    %v388 = vsel %vm368, %v340, 0
    %v391 = vsel %vm368, %v341, 0
    %v394 = vsel %vm368, %v342, 0
    %v397 = vsel %vm368, %v343, 0
    %v400 = vsel %vm368, %v344, 0
    %v403 = vsel %vm368, %v345, 0
    %v406 = vsel %vm368, %v346, 0
    %v409 = vsel %vm368, %v347, 0
    %v412 = vsel %vm368, %v348, 0
    %v415 = vsel %vm368, %v349, 0
    %v418 = vsel %vm368, %v350, 0
    %v421 = vsel %vm368, %v351, 0
    %v424 = vsel %vm368, %v352, 0
    %v427 = vsel %vm368, %v353, 0
    %v430 = vsel %vm368, %v354, 0
    %v433 = vsel %vm368, %v355, 0
    %v436 = vsel %vm368, %v356, 0
    %v439 = vsel %vm368, %v357, 0
    %v442 = vsel %vm368, %v358, 0
    %v445 = vsel %vm368, %v359, 0
    %v448 = vsel %vm368, %v360, 0
    %v451 = vsel %vm368, %v361, 0
    %v454 = vsel %vm368, %v362, 0
    %v457 = vsel %vm368, %v363, 0
    %v460 = vsel %vm368, %v364, 0
    %v463 = vsel %vm368, %v365, 0
    %465 = vmatprep.subr.mxu0 0.0
    %466 = vmatpush1.msra.mxu0 0.0
    %467 = vmatprep.subr.mxu0 0.0
    %468 = vmatpush1.msra.mxu0 0.0
    %469 = vmatprep.subr.mxu0 0.0
    %470 = vmatpush1.msra.mxu0 0.0
    %471 = vmatprep.subr.mxu0 0.0
    %472 = vmatpush1.msra.mxu0 0.0
    %473 = vmatprep.subr.mxu0 0.0
    %474 = vmatpush1.msra.mxu0 0.0
    %475 = vmatprep.subr.mxu0 0.0
    %476 = vmatpush1.msra.mxu0 0.0
    %477 = vmatprep.subr.mxu0 0.0
    %478 = vmatpush1.msra.mxu0 0.0
    %479 = vmatprep.subr.mxu0 0.0
    %480 = vmatpush1.msra.mxu0 0.0
    %481 = vmatprep.subr.mxu0 0.0
    %482 = vmatpush1.msra.mxu0 0.0
    %483 = vmatprep.subr.mxu0 0.0
    %484 = vmatpush1.msra.mxu0 0.0
    %485 = vmatprep.subr.mxu0 0.0
    %486 = vmatpush1.msra.mxu0 0.0
    %487 = vmatprep.subr.mxu0 0.0
    %488 = vmatpush1.msra.mxu0 0.0
    %489 = vmatprep.subr.mxu0 0.0
    %490 = vmatpush1.msra.mxu0 0.0
    %491 = vmatprep.subr.mxu0 0.0
    %492 = vmatpush1.msra.mxu0 0.0
    %493 = vmatprep.subr.mxu0 0.0
    %494 = vmatpush1.msra.mxu0 %v367
    %495 = vmatprep.subr.mxu0 0.0
    %496 = vmatpush1.msra.mxu0 %v366
    %497 = vmatprep.subr.mxu0 0.0
    %498 = vmatpush2.msra.mxu0 0.0
    %499 = vmatprep.subr.mxu0 0.0
    %500 = vmatpush2.msra.mxu0 0.0
    %501 = vmatprep.subr.mxu0 0.0
    %502 = vmatpush2.msra.mxu0 0.0
    %503 = vmatprep.subr.mxu0 0.0
    %504 = vmatpush2.msra.mxu0 0.0
    %505 = vmatprep.subr.mxu0 0.0
    %506 = vmatpush2.msra.mxu0 0.0
    %507 = vmatprep.subr.mxu0 0.0
    %508 = vmatpush2.msra.mxu0 0.0
    %509 = vmatprep.subr.mxu0 0.0
    %510 = vmatpush2.msra.mxu0 0.0
    %511 = vmatprep.subr.mxu0 0.0
    %512 = vmatpush2.msra.mxu0 0.0
    %513 = vmatprep.subr.mxu0 0.0
    %514 = vmatpush2.msra.mxu0 0.0
    %515 = vmatprep.subr.mxu0 0.0
    %516 = vmatpush2.msra.mxu0 0.0
    %517 = vmatprep.subr.mxu0 0.0
    %518 = vmatpush2.msra.mxu0 0.0
    %519 = vmatprep.subr.mxu0 0.0
    %520 = vmatpush2.msra.mxu0 0.0
    %521 = vmatprep.subr.mxu0 0.0
    %522 = vmatpush2.msra.mxu0 0.0
    %523 = vmatprep.subr.mxu0 0.0
    %524 = vmatpush2.msra.mxu0 0.0
    %525 = vmatprep.subr.mxu0 0.0
    %526 = vmatpush2.msra.mxu0 0.0
    %527 = vmatprep.subr.mxu0 0.0
    %528 = vmatpush2.msra.mxu0 0.0
    %529 = vmatprep.mubr.f32.mxu0 0.0
    %530 = vmatmul.mubr.f32.gmra.mxu0 %v370
    %v531 = vpop.f32.mrf.mxu0
    %v532 = vadd.f32 0.0, %v531
    %v533 = vpop.f32.mrf.mxu0
    %534 = vmatprep.mubr.f32.mxu0 0.0
    %535 = vmatmul.mubr.f32.gmra.mxu0 %v373
    %v536 = vpop.f32.mrf.mxu0
    %v537 = vadd.f32 0.0, %v536
    %v538 = vpop.f32.mrf.mxu0
    %539 = vmatprep.mubr.f32.mxu0 0.0
    %540 = vmatmul.mubr.f32.gmra.mxu0 %v376
    %v541 = vpop.f32.mrf.mxu0
    %v542 = vadd.f32 0.0, %v541
    %v543 = vpop.f32.mrf.mxu0
    %544 = vmatprep.mubr.f32.mxu0 0.0
    %545 = vmatmul.mubr.f32.gmra.mxu0 %v379
    %v546 = vpop.f32.mrf.mxu0
    %v547 = vadd.f32 0.0, %v546
    %v548 = vpop.f32.mrf.mxu0
    %549 = vmatprep.mubr.f32.mxu0 0.0
    %550 = vmatmul.mubr.f32.gmra.mxu0 %v382
    %v551 = vpop.f32.mrf.mxu0
    %v552 = vadd.f32 0.0, %v551
    %v553 = vpop.f32.mrf.mxu0
    %554 = vmatprep.mubr.f32.mxu0 0.0
    %555 = vmatmul.mubr.f32.gmra.mxu0 %v385
    %v556 = vpop.f32.mrf.mxu0
    %v557 = vadd.f32 0.0, %v556
    %v558 = vpop.f32.mrf.mxu0
    %559 = vmatprep.mubr.f32.mxu0 0.0
    %560 = vmatmul.mubr.f32.gmra.mxu0 %v388
    %v561 = vpop.f32.mrf.mxu0
    %v562 = vadd.f32 0.0, %v561
    %v563 = vpop.f32.mrf.mxu0
    %564 = vmatprep.mubr.f32.mxu0 0.0
    %565 = vmatmul.mubr.f32.gmra.mxu0 %v391
    %v566 = vpop.f32.mrf.mxu0
    %v567 = vadd.f32 0.0, %v566
    %v568 = vpop.f32.mrf.mxu0
    %569 = vmatprep.mubr.f32.mxu0 0.0
    %570 = vmatmul.mubr.f32.gmra.mxu0 %v394
    %v571 = vpop.f32.mrf.mxu0
    %v572 = vadd.f32 0.0, %v571
    %v573 = vpop.f32.mrf.mxu0
    %574 = vmatprep.mubr.f32.mxu0 0.0
    %575 = vmatmul.mubr.f32.gmra.mxu0 %v397
    %v576 = vpop.f32.mrf.mxu0
    %v577 = vadd.f32 0.0, %v576
    %v578 = vpop.f32.mrf.mxu0
    %579 = vmatprep.mubr.f32.mxu0 0.0
    %580 = vmatmul.mubr.f32.gmra.mxu0 %v400
    %v581 = vpop.f32.mrf.mxu0
    %v582 = vadd.f32 0.0, %v581
    %v583 = vpop.f32.mrf.mxu0
    %584 = vmatprep.mubr.f32.mxu0 0.0
    %585 = vmatmul.mubr.f32.gmra.mxu0 %v403
    %v586 = vpop.f32.mrf.mxu0
    %v587 = vadd.f32 0.0, %v586
    %v588 = vpop.f32.mrf.mxu0
    %589 = vmatprep.mubr.f32.mxu0 0.0
    %590 = vmatmul.mubr.f32.gmra.mxu0 %v406
    %v591 = vpop.f32.mrf.mxu0
    %v592 = vadd.f32 0.0, %v591
    %v593 = vpop.f32.mrf.mxu0
    %594 = vmatprep.mubr.f32.mxu0 0.0
    %595 = vmatmul.mubr.f32.gmra.mxu0 %v409
    %v596 = vpop.f32.mrf.mxu0
    %v597 = vadd.f32 0.0, %v596
    %v598 = vpop.f32.mrf.mxu0
    %599 = vmatprep.mubr.f32.mxu0 0.0
    %600 = vmatmul.mubr.f32.gmra.mxu0 %v412
    %v601 = vpop.f32.mrf.mxu0
    %v602 = vadd.f32 0.0, %v601
    %v603 = vpop.f32.mrf.mxu0
    %604 = vmatprep.mubr.f32.mxu0 0.0
    %605 = vmatmul.mubr.f32.gmra.mxu0 %v415
    %v606 = vpop.f32.mrf.mxu0
    %v607 = vadd.f32 0.0, %v606
    %v608 = vpop.f32.mrf.mxu0
    %609 = vmatprep.mubr.f32.mxu0 0.0
    %610 = vmatmul.mubr.f32.gmra.mxu0 %v418
    %v611 = vpop.f32.mrf.mxu0
    %v612 = vadd.f32 0.0, %v611
    %v613 = vpop.f32.mrf.mxu0
    %614 = vmatprep.mubr.f32.mxu0 0.0
    %615 = vmatmul.mubr.f32.gmra.mxu0 %v421
    %v616 = vpop.f32.mrf.mxu0
    %v617 = vadd.f32 0.0, %v616
    %v618 = vpop.f32.mrf.mxu0
    %619 = vmatprep.mubr.f32.mxu0 0.0
    %620 = vmatmul.mubr.f32.gmra.mxu0 %v424
    %v621 = vpop.f32.mrf.mxu0
    %v622 = vadd.f32 0.0, %v621
    %v623 = vpop.f32.mrf.mxu0
    %624 = vmatprep.mubr.f32.mxu0 0.0
    %625 = vmatmul.mubr.f32.gmra.mxu0 %v427
    %v626 = vpop.f32.mrf.mxu0
    %v627 = vadd.f32 0.0, %v626
    %v628 = vpop.f32.mrf.mxu0
    %629 = vmatprep.mubr.f32.mxu0 0.0
    %630 = vmatmul.mubr.f32.gmra.mxu0 %v430
    %v631 = vpop.f32.mrf.mxu0
    %v632 = vadd.f32 0.0, %v631
    %v633 = vpop.f32.mrf.mxu0
    %634 = vmatprep.mubr.f32.mxu0 0.0
    %635 = vmatmul.mubr.f32.gmra.mxu0 %v433
    %v636 = vpop.f32.mrf.mxu0
    %v637 = vadd.f32 0.0, %v636
    %v638 = vpop.f32.mrf.mxu0
    %639 = vmatprep.mubr.f32.mxu0 0.0
    %640 = vmatmul.mubr.f32.gmra.mxu0 %v436
    %v641 = vpop.f32.mrf.mxu0
    %v642 = vadd.f32 0.0, %v641
    %v643 = vpop.f32.mrf.mxu0
    %644 = vmatprep.mubr.f32.mxu0 0.0
    %645 = vmatmul.mubr.f32.gmra.mxu0 %v439
    %v646 = vpop.f32.mrf.mxu0
    %v647 = vadd.f32 0.0, %v646
    %v648 = vpop.f32.mrf.mxu0
    %649 = vmatprep.mubr.f32.mxu0 0.0
    %650 = vmatmul.mubr.f32.gmra.mxu0 %v442
    %v651 = vpop.f32.mrf.mxu0
    %v652 = vadd.f32 0.0, %v651
    %v653 = vpop.f32.mrf.mxu0
    %654 = vmatprep.mubr.f32.mxu0 0.0
    %655 = vmatmul.mubr.f32.gmra.mxu0 %v445
    %v656 = vpop.f32.mrf.mxu0
    %v657 = vadd.f32 0.0, %v656
    %v658 = vpop.f32.mrf.mxu0
    %659 = vmatprep.mubr.f32.mxu0 0.0
    %660 = vmatmul.mubr.f32.gmra.mxu0 %v448
    %v661 = vpop.f32.mrf.mxu0
    %v662 = vadd.f32 0.0, %v661
    %v663 = vpop.f32.mrf.mxu0
    %664 = vmatprep.mubr.f32.mxu0 0.0
    %665 = vmatmul.mubr.f32.gmra.mxu0 %v451
    %v666 = vpop.f32.mrf.mxu0
    %v667 = vadd.f32 0.0, %v666
    %v668 = vpop.f32.mrf.mxu0
    %669 = vmatprep.mubr.f32.mxu0 0.0
    %670 = vmatmul.mubr.f32.gmra.mxu0 %v454
    %v671 = vpop.f32.mrf.mxu0
    %v672 = vadd.f32 0.0, %v671
    %v673 = vpop.f32.mrf.mxu0
    %674 = vmatprep.mubr.f32.mxu0 0.0
    %675 = vmatmul.mubr.f32.gmra.mxu0 %v457
    %v676 = vpop.f32.mrf.mxu0
    %v677 = vadd.f32 0.0, %v676
    %v678 = vpop.f32.mrf.mxu0
    %679 = vmatprep.mubr.f32.mxu0 0.0
    %680 = vmatmul.mubr.f32.gmra.mxu0 %v460
    %v681 = vpop.f32.mrf.mxu0
    %v682 = vadd.f32 0.0, %v681
    %v683 = vpop.f32.mrf.mxu0
    %684 = vmatprep.mubr.f32.mxu0 0.0
    %685 = vmatmul.mubr.f32.gmra.mxu0 %v463
    %v686 = vpop.f32.mrf.mxu0
    %v687 = vadd.f32 0.0, %v686
    %v688 = vpop.f32.mrf.mxu0
    %689 = vdwg.mxu0
    %690 = vst [vmem:[#allocation2] sm:$0xff] %v532
    %691 = vst [vmem:[#allocation2 + $0x8] sm:$0xff] %v537
    %692 = vst [vmem:[#allocation2 + $0x10] sm:$0xff] %v542
    %693 = vst [vmem:[#allocation2 + $0x18] sm:$0xff] %v547
    %694 = vst [vmem:[#allocation2 + $0x20] sm:$0xff] %v552
    %695 = vst [vmem:[#allocation2 + $0x28] sm:$0xff] %v557
    %696 = vst [vmem:[#allocation2 + $0x30] sm:$0xff] %v562
    %697 = vst [vmem:[#allocation2 + $0x38] sm:$0xff] %v567
    %698 = vst [vmem:[#allocation2 + $0x40] sm:$0xff] %v572
    %699 = vst [vmem:[#allocation2 + $0x48] sm:$0xff] %v577
    %700 = vst [vmem:[#allocation2 + $0x50] sm:$0xff] %v582
    %701 = vst [vmem:[#allocation2 + $0x58] sm:$0xff] %v587
    %702 = vst [vmem:[#allocation2 + $0x60] sm:$0xff] %v592
    %703 = vst [vmem:[#allocation2 + $0x68] sm:$0xff] %v597
    %704 = vst [vmem:[#allocation2 + $0x70] sm:$0xff] %v602
    %705 = vst [vmem:[#allocation2 + $0x78] sm:$0xff] %v607
    %706 = vst [vmem:[#allocation2 + $0x80] sm:$0xff] %v612
    %707 = vst [vmem:[#allocation2 + $0x88] sm:$0xff] %v617
    %708 = vst [vmem:[#allocation2 + $0x90] sm:$0xff] %v622
    %709 = vst [vmem:[#allocation2 + $0x98] sm:$0xff] %v627
    %710 = vst [vmem:[#allocation2 + $0xa0] sm:$0xff] %v632
    %711 = vst [vmem:[#allocation2 + $0xa8] sm:$0xff] %v637
    %712 = vst [vmem:[#allocation2 + $0xb0] sm:$0xff] %v642
    %713 = vst [vmem:[#allocation2 + $0xb8] sm:$0xff] %v647
    %714 = vst [vmem:[#allocation2 + $0xc0] sm:$0xff] %v652
    %715 = vst [vmem:[#allocation2 + $0xc8] sm:$0xff] %v657
    %716 = vst [vmem:[#allocation2 + $0xd0] sm:$0xff] %v662
    %717 = vst [vmem:[#allocation2 + $0xd8] sm:$0xff] %v667
    %718 = vst [vmem:[#allocation2 + $0xe0] sm:$0xff] %v672
    %719 = vst [vmem:[#allocation2 + $0xe8] sm:$0xff] %v677
    %720 = vst [vmem:[#allocation2 + $0xf0] sm:$0xff] %v682
    %721 = vst [vmem:[#allocation2 + $0xf8] sm:$0xff] %v687
    // Predicated region
    $region10: #{tpu_custom_call.1} parent=1 // pred_check
      _
    $region11: #{tpu_custom_call.1} parent=1 // pred_check_branch
      %723 = sbr.rel (0) target = $region13
    $region12: #{tpu_custom_call.1} parent=1 // pred_region
      %s725 = ssub.s32 4096, 4096
      %726 = vsyncadd [#allocation3], %s725
      %s727 = sshll.u32 [#allocation2], 4
      %s728 = int_to_ptr.vmem [resolvable:$true] %s727
      %733 = dma.vmem_to_hbm [thread:$0]  %s728, 4096, %s2, [#allocation3], 128, 128, 8
    $region13: #{tpu_custom_call.1} parent=1 // pred_fallthru
      _
    // Predicated region
    $region14: #{tpu_custom_call.1} parent=1 // pred_check
      _
    $region15: #{tpu_custom_call.1} parent=1 // pred_check_branch
      %735 = sbr.rel (0) target = $region17
    $region16: #{tpu_custom_call.1} parent=1 // pred_region
      %736 = dma.done [#allocation3], 4096
    $region17: #{tpu_custom_call.1} parent=1 // pred_fallthru
      _
    %737 = vsyncpa [#allocation3], 1

</llo_original>
